<compile_context>
chip_gen: v7x
topology: tpu7x:2x2x1
jax: 0.10.0
libtpu: 0.0.40
codegen_flags: <defaults>
</compile_context>

<pallas_src>
import numpy as np
import jax
import jax.numpy as jnp
from jax.experimental import pallas as pl
from jax.experimental.pallas import tpu as pltpu

# ----------------------------------------------------------------------------
# Synthetic module configuration
# ----------------------------------------------------------------------------
# (name, single_label_task, vocab_len, modals)
TASKS = [
    ("modal_sense", True, 4, ["text", "speech"]),
    ("aspect", False, 3, ["text"]),
]

EMBED_DIM = 32
BATCH = 8
NEG_BIG = -1e30
SIGMOID_THRESHOLD = 0.5


def _build_head_table():
    heads = []           # (task_ix, vocab_len, single_label)
    task_start = {}      # tasks2start_ix_in_all_heads_tensor
    start = 0
    for ti, (name, single, vlen, modals) in enumerate(TASKS):
        task_start[name] = start
        for _ in modals:            # one Head per modal (use_per_modal_heads)
            heads.append((ti, vlen, single))
        start += len(modals)
    return heads, task_start


HEADS, TASK_START = _build_head_table()
NUM_HEADS = len(HEADS)
VMAX = max(t[2] for t in TASKS)
HV = NUM_HEADS * VMAX                      # fused (lane-packed) logits width
HV_PAD = ((HV + 127) // 128) * 128         # lane-dense packed width

# per-task padded logits / preds layout (ConstantPad1d emulation)
LOGITS_SPAN = {}
PREDS_SPAN = {}
_lleft, _pleft = 0, 0
for name, single, vlen, modals in TASKS:
    pwidth = 1 if single else vlen
    LOGITS_SPAN[name] = (_lleft, _lleft + vlen)
    PREDS_SPAN[name] = (_pleft, _pleft + pwidth)
    _lleft += vlen
    _pleft += pwidth
LOGITS_W = _lleft      # per_heads_padded_logits_width
PREDS_W = _pleft       # per_head_padded_preds_width
OUT_W = LOGITS_W + PREDS_W                 # packed kernel output: [confs | preds]
OUT_PAD = ((OUT_W + 127) // 128) * 128     # lane-dense output width


# ----------------------------------------------------------------------------
# Pallas kernel: fused all-head linear + activation + prediction + scatter
# ----------------------------------------------------------------------------
def _modal_classifier_kernel(emb_ref, w_ref, b_ref, sel_ref, validhv_ref,
                             single_ref, thr_ref, lanehv_ref,
                             pconf_ref, ppred_ref, pmask_ref, out_ref):
    # One matmul for every head (dropout is identity in eval mode).
    x = emb_ref[...]                                                   # [B, E]
    logits = jnp.dot(x, w_ref[...],
                     preferred_element_type=jnp.float32) + b_ref[...]  # [B, HV_PAD]

    sel = sel_ref[...]                    # [B, HV_PAD] 1 on the selected head's columns
    selvalid_f = sel * validhv_ref[...]   # restrict to the head's valid vocab columns
    selvalid = selvalid_f > 0.5
    single = single_ref[...] > 0.5        # [B, 1]  single-label head?
    thr = thr_ref[...]                    # [B, 1]  sigmoid threshold
    lane = lanehv_ref[...]                # [1, HV_PAD] within-head column index (float)

    # softmax over the selected head's valid columns (single-label heads)
    masked = jnp.where(selvalid, logits, NEG_BIG)
    m = jnp.max(masked, axis=1, keepdims=True)
    e = jnp.exp(masked - m)
    sm = e / jnp.sum(e, axis=1, keepdims=True)
    # sigmoid (multi-label heads)
    sg = jax.nn.sigmoid(logits)
    # per-row head-type select; zero everything outside the selected head/vocab
    probs = jnp.where(single, sm, sg) * selvalid_f                     # [B, HV_PAD]

    rowmax = jnp.max(probs, axis=1, keepdims=True)
    is_max = (probs == rowmax) & selvalid
    # first-occurrence argmax (within-head index) via iota-min trick
    amax = jnp.min(jnp.where(is_max, lane, float(VMAX)),
                   axis=1, keepdims=True)                              # [B, 1]
    pred_single = jnp.where(lane == 0.0, amax, 0.0) * sel              # amax at head col 0
    pred_multi = jnp.where((probs > thr) | is_max, 1.0, 0.0)
    # "+100 / -100" trick so un-selected pred columns become the -100 pad fill
    preds = jnp.where(single, pred_single, pred_multi) + 100.0 * sel   # [B, HV_PAD]

    # Static 0/1 scatter (exact in f32): head column -> padded conf/pred column.
    out = (jnp.dot(probs, pconf_ref[...], preferred_element_type=jnp.float32)
           + jnp.dot(preds, ppred_ref[...], preferred_element_type=jnp.float32)
           - 100.0 * pmask_ref[...])                                   # [B, OUT_PAD]
    out_ref[...] = out


def _vmem_spec():
    return pl.BlockSpec(memory_space=pltpu.MemorySpace.VMEM)


@jax.jit
def _forward_jit(emb, w_all, b_all, sel, validhv, single, thr,
                 lanehv, pconf, ppred, pmask):
    packed = pl.pallas_call(
        _modal_classifier_kernel,
        out_shape=jax.ShapeDtypeStruct((emb.shape[0], OUT_PAD), jnp.float32),
        in_specs=[_vmem_spec()] * 11,
        out_specs=_vmem_spec(),
    )(emb, w_all, b_all, sel, validhv, single, thr, lanehv, pconf, ppred, pmask)
    confidences = packed[:, :LOGITS_W]
    predictions = packed[:, LOGITS_W:OUT_W]
    return predictions, confidences


# ----------------------------------------------------------------------------
# Static tables (built once; mirrors the PyTorch __init__ Python bookkeeping)
# ----------------------------------------------------------------------------
def _build_static_tables():
    validhv = np.zeros((1, HV_PAD), np.float32)   # 1 on valid vocab columns of each head
    lanehv = np.full((1, HV_PAD), float(VMAX), np.float32)  # within-head column index
    pconf = np.zeros((HV_PAD, OUT_PAD), np.float32)  # head column -> padded conf column
    ppred = np.zeros((HV_PAD, OUT_PAD), np.float32)  # head column -> padded pred column
    pmask = np.zeros((1, OUT_PAD), np.float32)       # 1.0 on the (real) pred region
    pmask[0, LOGITS_W:OUT_W] = 1.0
    for hi, (ti, vlen, single) in enumerate(HEADS):
        name = TASKS[ti][0]
        llo, _ = LOGITS_SPAN[name]
        plo, _ = PREDS_SPAN[name]
        pwidth = 1 if single else vlen
        base = hi * VMAX
        for j in range(VMAX):
            lanehv[0, base + j] = float(j)
        for j in range(vlen):
            validhv[0, base + j] = 1.0
            pconf[base + j, llo + j] = 1.0
        for j in range(pwidth):
            ppred[base + j, LOGITS_W + plo + j] = 1.0
    return (jnp.asarray(validhv), jnp.asarray(lanehv), jnp.asarray(pconf),
            jnp.asarray(ppred), jnp.asarray(pmask))


VALIDHV, LANEHV, PCONF, PPRED, PMASK = _build_static_tables()


def compute_matrix_indices(task_names, modal_indices, domain_indices):
    tasks_by_name = {t[0]: t for t in TASKS}
    out = []
    for task, d_ix, m_ix in zip(task_names, domain_indices, modal_indices):
        start = TASK_START[task]
        d_ix = 0                                      # use_per_domain_heads=False
        num_per_modal = len(tasks_by_name[task][3])   # use_per_modal_heads=True
        out.append(start + d_ix * num_per_modal + m_ix)
    return np.array(out, dtype=np.int32)


def build_row_metadata(task_names, modal_indices, domain_indices):
    mi = compute_matrix_indices(task_names, modal_indices, domain_indices)
    B = len(task_names)
    sel = np.zeros((B, HV_PAD), np.float32)
    single = np.zeros((B, 1), np.float32)
    thr = np.full((B, 1), SIGMOID_THRESHOLD, np.float32)
    for r, h in enumerate(mi):
        _, vlen, s = HEADS[h]
        sel[r, h * VMAX:h * VMAX + VMAX] = 1.0
        single[r, 0] = 1.0 if s else 0.0
    return jnp.asarray(sel), jnp.asarray(single), jnp.asarray(thr)


def modal_classifier_forward(embedded, w_all, b_all,
                             task_names, modal_indices, domain_indices):
    sel, single, thr = build_row_metadata(task_names, modal_indices, domain_indices)
    # TODO(synk): training/validation loss path (tasks2losses) omitted — evaluation mode only.
    return _forward_jit(embedded, w_all, b_all, sel, VALIDHV, single, thr,
                        LANEHV, PCONF, PPRED, PMASK)


# ----------------------------------------------------------------------------
# Deterministic parameter init + pure-numpy reference
# ----------------------------------------------------------------------------
def init_params(key):
    ws = np.zeros((EMBED_DIM, HV_PAD), np.float32)      # lane-packed, zero-padded
    bs = np.zeros((1, HV_PAD), np.float32)
    raw = []
    for hi, (ti, vlen, single) in enumerate(HEADS):
        key, k1, k2 = jax.random.split(key, 3)
        w = jax.random.normal(k1, (vlen, EMBED_DIM), jnp.float32) * 0.1  # nn.Linear weight [out, in]
        b = jax.random.normal(k2, (vlen,), jnp.float32) * 0.1
        ws[:, hi * VMAX:hi * VMAX + vlen] = np.asarray(w).T
        bs[0, hi * VMAX:hi * VMAX + vlen] = np.asarray(b)
        raw.append((np.asarray(w), np.asarray(b)))
    return jnp.asarray(ws), jnp.asarray(bs), raw


def reference_forward(embedded, raw_params, task_names, modal_indices, domain_indices):
    emb = np.asarray(embedded)
    head_preds, head_confs = [], []
    for hi, (ti, vlen, single) in enumerate(HEADS):
        name = TASKS[ti][0]
        w, b = raw_params[hi]
        logits = emb @ w.T + b
        if single:
            z = np.exp(logits - logits.max(1, keepdims=True))
            probs = z / z.sum(1, keepdims=True)
            preds = probs.argmax(1)[:, None].astype(np.float32)
        else:
            probs = 1.0 / (1.0 + np.exp(-logits))
            rowmax = probs.max(1, keepdims=True)
            preds = np.where((probs > SIGMOID_THRESHOLD) | (probs == rowmax), 1.0, 0.0).astype(np.float32)
        llo, lhi = LOGITS_SPAN[name]
        plo, phi = PREDS_SPAN[name]
        head_confs.append(np.pad(probs, ((0, 0), (llo, LOGITS_W - lhi))))
        head_preds.append(np.pad(preds, ((0, 0), (plo, PREDS_W - phi)), constant_values=-100.0))
    all_preds = np.stack(head_preds)
    all_confs = np.stack(head_confs)
    mi = compute_matrix_indices(task_names, modal_indices, domain_indices)
    rows = np.arange(len(task_names))
    return all_preds[mi, rows, :], all_confs[mi, rows, :]


# ----------------------------------------------------------------------------
if __name__ == "__main__":
    # TODO(synk): the real Embedder (external text encoder) is out of scope; we
    # feed its output ("embedded") directly as a deterministic random tensor.
    key = jax.random.PRNGKey(0)
    key, ek = jax.random.split(key)
    embedded = jax.random.normal(ek, (BATCH, EMBED_DIM), jnp.float32)

    w_all, b_all, raw_params = init_params(jax.random.PRNGKey(1))

    task_names = ["modal_sense", "modal_sense", "aspect", "modal_sense",
                  "aspect", "modal_sense", "modal_sense", "aspect"]
    modal_indices = [0, 1, 0, 0, 0, 1, 0, 0]
    domain_indices = [0] * BATCH

    predictions, confidences = modal_classifier_forward(
        embedded, w_all, b_all, task_names, modal_indices, domain_indices)
    jax.block_until_ready((predictions, confidences))

    ref_preds, ref_confs = reference_forward(
        embedded, raw_params, task_names, modal_indices, domain_indices)
    assert np.allclose(np.asarray(predictions), ref_preds, atol=1e-5), "predictions mismatch"
    assert np.allclose(np.asarray(confidences), ref_confs, atol=1e-5), "confidences mismatch"

    print("KERNEL_OK")
</pallas_src>

<mosaic_0001>
module attributes {stable_mosaic.version = 11 : i64} {
  func.func @_modal_classifier_kernel(%arg0: memref<8x32xf32, #tpu.memory_space<vmem>>, %arg1: memref<32x128xf32, #tpu.memory_space<vmem>>, %arg2: memref<1x128xf32, #tpu.memory_space<vmem>>, %arg3: memref<8x128xf32, #tpu.memory_space<vmem>>, %arg4: memref<1x128xf32, #tpu.memory_space<vmem>>, %arg5: memref<8x1xf32, #tpu.memory_space<vmem>>, %arg6: memref<8x1xf32, #tpu.memory_space<vmem>>, %arg7: memref<1x128xf32, #tpu.memory_space<vmem>>, %arg8: memref<128x128xf32, #tpu.memory_space<vmem>>, %arg9: memref<128x128xf32, #tpu.memory_space<vmem>>, %arg10: memref<1x128xf32, #tpu.memory_space<vmem>>, %arg11: memref<8x128xf32, #tpu.memory_space<vmem>>) attributes {dimension_semantics = [], scalar_prefetch = 0 : i64, scratch_operands = 0 : i64, tpu.core_type = #tpu.core_type<tc>} {
    %c0 = arith.constant 0 : index
    %c0_0 = arith.constant 0 : index
    %0 = vector.load %arg0[%c0, %c0_0] : memref<8x32xf32, #tpu.memory_space<vmem>>, vector<8x32xf32>
    %c0_1 = arith.constant 0 : index
    %c0_2 = arith.constant 0 : index
    %1 = vector.load %arg1[%c0_1, %c0_2] : memref<32x128xf32, #tpu.memory_space<vmem>>, vector<32x128xf32>
    %cst = arith.constant dense<0.000000e+00> : vector<8x128xf32>
    %2 = tpu.matmul %0, %1, %cst {dimension_numbers = #tpu.dot_dimension_numbers<[1], [0], [0], [1], [0, 0, 1, 1], [], []>} : vector<8x32xf32>, vector<32x128xf32>, vector<8x128xf32> -> vector<8x128xf32>
    %c0_3 = arith.constant 0 : index
    %c0_4 = arith.constant 0 : index
    %3 = vector.load %arg2[%c0_3, %c0_4] : memref<1x128xf32, #tpu.memory_space<vmem>>, vector<1x128xf32>
    %4 = vector.broadcast %3 : vector<1x128xf32> to vector<8x128xf32>
    %5 = arith.addf %2, %4 : vector<8x128xf32>
    %c0_5 = arith.constant 0 : index
    %c0_6 = arith.constant 0 : index
    %6 = vector.load %arg3[%c0_5, %c0_6] : memref<8x128xf32, #tpu.memory_space<vmem>>, vector<8x128xf32>
    %c0_7 = arith.constant 0 : index
    %c0_8 = arith.constant 0 : index
    %7 = vector.load %arg4[%c0_7, %c0_8] : memref<1x128xf32, #tpu.memory_space<vmem>>, vector<1x128xf32>
    %8 = vector.broadcast %7 : vector<1x128xf32> to vector<8x128xf32>
    %9 = arith.mulf %6, %8 : vector<8x128xf32>
    %cst_9 = arith.constant 5.000000e-01 : f32
    %10 = vector.broadcast %cst_9 : f32 to vector<8x128xf32>
    %11 = arith.cmpf ogt, %9, %10 : vector<8x128xf32>
    %c0_10 = arith.constant 0 : index
    %c0_11 = arith.constant 0 : index
    %12 = vector.load %arg5[%c0_10, %c0_11] : memref<8x1xf32, #tpu.memory_space<vmem>>, vector<8x1xf32>
    %cst_12 = arith.constant 5.000000e-01 : f32
    %13 = vector.broadcast %cst_12 : f32 to vector<8x1xf32>
    %14 = arith.cmpf ogt, %12, %13 : vector<8x1xf32>
    %c0_13 = arith.constant 0 : index
    %c0_14 = arith.constant 0 : index
    %15 = vector.load %arg6[%c0_13, %c0_14] : memref<8x1xf32, #tpu.memory_space<vmem>>, vector<8x1xf32>
    %c0_15 = arith.constant 0 : index
    %c0_16 = arith.constant 0 : index
    %16 = vector.load %arg7[%c0_15, %c0_16] : memref<1x128xf32, #tpu.memory_space<vmem>>, vector<1x128xf32>
    %cst_17 = arith.constant -1.000000e+30 : f32
    %17 = vector.broadcast %cst_17 : f32 to vector<8x128xf32>
    %18 = arith.select %11, %5, %17 : vector<8x128xi1>, vector<8x128xf32>
    %cst_18 = arith.constant dense<0xFF800000> : vector<8xf32>
    %19 = vector.multi_reduction <maximumf>, %18, %cst_18 [1] : vector<8x128xf32> to vector<8xf32>
    %20 = vector.shape_cast %19 : vector<8xf32> to vector<8x1xf32>
    %21 = vector.broadcast %20 : vector<8x1xf32> to vector<8x128xf32>
    %22 = arith.subf %18, %21 : vector<8x128xf32>
    %23 = math.exp %22 : vector<8x128xf32>
    %cst_19 = arith.constant dense<0.000000e+00> : vector<8xf32>
    %24 = vector.multi_reduction <add>, %23, %cst_19 [1] : vector<8x128xf32> to vector<8xf32>
    %25 = vector.shape_cast %24 : vector<8xf32> to vector<8x1xf32>
    %26 = vector.broadcast %25 : vector<8x1xf32> to vector<8x128xf32>
    %27 = arith.divf %23, %26 : vector<8x128xf32>
    %28 = arith.negf %5 : vector<8x128xf32>
    %29 = math.exp %28 : vector<8x128xf32>
    %cst_20 = arith.constant 1.000000e+00 : f32
    %30 = vector.broadcast %cst_20 : f32 to vector<8x128xf32>
    %31 = arith.addf %30, %29 : vector<8x128xf32>
    %32 = arith.divf %30, %31 : vector<8x128xf32>
    %33 = vector.shape_cast %14 : vector<8x1xi1> to vector<8x1xi1>
    %34 = vector.broadcast %33 : vector<8x1xi1> to vector<8x128xi1>
    %35 = arith.select %34, %27, %32 : vector<8x128xi1>, vector<8x128xf32>
    %36 = arith.mulf %35, %9 : vector<8x128xf32>
    %cst_21 = arith.constant dense<0xFF800000> : vector<8xf32>
    %37 = vector.multi_reduction <maximumf>, %36, %cst_21 [1] : vector<8x128xf32> to vector<8xf32>
    %38 = vector.shape_cast %37 : vector<8xf32> to vector<8x1xf32>
    %39 = vector.broadcast %38 : vector<8x1xf32> to vector<8x128xf32>
    %40 = arith.cmpf oeq, %36, %39 : vector<8x128xf32>
    %41 = arith.andi %40, %11 : vector<8x128xi1>
    %cst_22 = arith.constant 4.000000e+00 : f32
    %42 = vector.shape_cast %16 : vector<1x128xf32> to vector<1x128xf32>
    %43 = vector.broadcast %42 : vector<1x128xf32> to vector<8x128xf32>
    %44 = vector.broadcast %cst_22 : f32 to vector<8x128xf32>
    %45 = arith.select %41, %43, %44 : vector<8x128xi1>, vector<8x128xf32>
    %cst_23 = arith.constant dense<0x7F800000> : vector<8xf32>
    %46 = vector.multi_reduction <minimumf>, %45, %cst_23 [1] : vector<8x128xf32> to vector<8xf32>
    %47 = vector.shape_cast %46 : vector<8xf32> to vector<8x1xf32>
    %cst_24 = arith.constant 0.000000e+00 : f32
    %48 = vector.broadcast %cst_24 : f32 to vector<1x128xf32>
    %49 = arith.cmpf oeq, %16, %48 : vector<1x128xf32>
    %cst_25 = arith.constant 0.000000e+00 : f32
    %50 = vector.shape_cast %49 : vector<1x128xi1> to vector<1x128xi1>
    %51 = vector.broadcast %50 : vector<1x128xi1> to vector<8x128xi1>
    %52 = vector.shape_cast %47 : vector<8x1xf32> to vector<8x1xf32>
    %53 = vector.broadcast %52 : vector<8x1xf32> to vector<8x128xf32>
    %54 = vector.broadcast %cst_25 : f32 to vector<8x128xf32>
    %55 = arith.select %51, %53, %54 : vector<8x128xi1>, vector<8x128xf32>
    %56 = arith.mulf %55, %6 : vector<8x128xf32>
    %57 = vector.broadcast %15 : vector<8x1xf32> to vector<8x128xf32>
    %58 = arith.cmpf ogt, %36, %57 : vector<8x128xf32>
    %59 = arith.ori %58, %41 : vector<8x128xi1>
    %cst_26 = arith.constant 1.000000e+00 : f32
    %cst_27 = arith.constant 0.000000e+00 : f32
    %60 = vector.broadcast %cst_26 : f32 to vector<8x128xf32>
    %61 = vector.broadcast %cst_27 : f32 to vector<8x128xf32>
    %62 = arith.select %59, %60, %61 : vector<8x128xi1>, vector<8x128xf32>
    %63 = vector.shape_cast %14 : vector<8x1xi1> to vector<8x1xi1>
    %64 = vector.broadcast %63 : vector<8x1xi1> to vector<8x128xi1>
    %65 = arith.select %64, %56, %62 : vector<8x128xi1>, vector<8x128xf32>
    %cst_28 = arith.constant 1.000000e+02 : f32
    %66 = vector.broadcast %cst_28 : f32 to vector<8x128xf32>
    %67 = arith.mulf %66, %6 : vector<8x128xf32>
    %68 = arith.addf %65, %67 : vector<8x128xf32>
    %c0_29 = arith.constant 0 : index
    %c0_30 = arith.constant 0 : index
    %69 = vector.load %arg8[%c0_29, %c0_30] : memref<128x128xf32, #tpu.memory_space<vmem>>, vector<128x128xf32>
    %cst_31 = arith.constant dense<0.000000e+00> : vector<8x128xf32>
    %70 = tpu.matmul %36, %69, %cst_31 {dimension_numbers = #tpu.dot_dimension_numbers<[1], [0], [0], [1], [0, 0, 1, 1], [], []>} : vector<8x128xf32>, vector<128x128xf32>, vector<8x128xf32> -> vector<8x128xf32>
    %c0_32 = arith.constant 0 : index
    %c0_33 = arith.constant 0 : index
    %71 = vector.load %arg9[%c0_32, %c0_33] : memref<128x128xf32, #tpu.memory_space<vmem>>, vector<128x128xf32>
    %cst_34 = arith.constant dense<0.000000e+00> : vector<8x128xf32>
    %72 = tpu.matmul %68, %71, %cst_34 {dimension_numbers = #tpu.dot_dimension_numbers<[1], [0], [0], [1], [0, 0, 1, 1], [], []>} : vector<8x128xf32>, vector<128x128xf32>, vector<8x128xf32> -> vector<8x128xf32>
    %73 = arith.addf %70, %72 : vector<8x128xf32>
    %c0_35 = arith.constant 0 : index
    %c0_36 = arith.constant 0 : index
    %74 = vector.load %arg10[%c0_35, %c0_36] : memref<1x128xf32, #tpu.memory_space<vmem>>, vector<1x128xf32>
    %cst_37 = arith.constant 1.000000e+02 : f32
    %75 = vector.broadcast %cst_37 : f32 to vector<1x128xf32>
    %76 = arith.mulf %75, %74 : vector<1x128xf32>
    %77 = vector.broadcast %76 : vector<1x128xf32> to vector<8x128xf32>
    %78 = arith.subf %73, %77 : vector<8x128xf32>
    %c0_38 = arith.constant 0 : index
    %c0_39 = arith.constant 0 : index
    %79 = vector.load %arg11[%c0_38, %c0_39] : memref<8x128xf32, #tpu.memory_space<vmem>>, vector<8x128xf32>
    tpu.vector_store %arg11[%c0_38, %c0_39], %78 {strides = array<i32>} : memref<8x128xf32, #tpu.memory_space<vmem>>, vector<8x128xf32>,
    return
  }
}

</mosaic_0001>

<llo_original>
// kernel: _forward_jit.1
$region0: #{_forward_jit.1}
  #allocation0 [shape = 'u32[]', space=smem, size = 0x4, offset = 0x4, fixed_abs, tag = 'smem constant byte address 0x4 - core index']
  #allocation1 [shape = 'u32[144,128]{1,0:T(1,128)}', space=vmem, size = 0x12000, scoped, tag = 'internal scratch']
  %s0 = inlined_call_operand.vmem [shape: f32[8,32], index: 0, kind: input, shape index: {}]
  %s1 = inlined_call_operand.hbm [shape: f32[32,128], index: 1, kind: input, shape index: {}]
  %s2 = inlined_call_operand.vmem [shape: f32[1,128], index: 2, kind: input, shape index: {}]
  %s3 = inlined_call_operand.vmem [shape: f32[8,128], index: 3, kind: input, shape index: {}]
  %s4 = inlined_call_operand.vmem [shape: f32[1,128], index: 4, kind: input, shape index: {}]
  %s5 = inlined_call_operand.vmem [shape: f32[8,1], index: 5, kind: input, shape index: {}]
  %s6 = inlined_call_operand.vmem [shape: f32[8,1], index: 6, kind: input, shape index: {}]
  %s7 = inlined_call_operand.vmem [shape: f32[1,128], index: 7, kind: input, shape index: {}]
  %s8 = inlined_call_operand.hbm [shape: f32[128,128], index: 8, kind: input, shape index: {}]
  %s9 = inlined_call_operand.hbm [shape: f32[128,128], index: 9, kind: input, shape index: {}]
  %s10 = inlined_call_operand.vmem [shape: f32[1,128], index: 10, kind: input, shape index: {}]
  %s11 = inlined_call_operand.vmem [shape: f32[8,128], index: 11, kind: output, shape index: {}]
  %s12 = sld [smem:[#allocation0]]
  $region66: #{_forward_jit.1} parent=0
    _
  %s14 = ssub.s32 1, %s12
  %s15 = scalar_select 0, %s14, %s12
  $region1: #{_forward_jit.1} parent=0
    #allocation2 [shape = 'u8[16384]{0}', space=vmem, size = 0x4000, scoped, tag = 'input window, operand 1, single buffered']
    #allocation3 [shape = 's32[1]{0}', space=sflag, size = 0x4, scoped, tag = 'scoped memory for _forward_jit.1']
    #allocation4 [shape = 'u8[65536]{0}', space=vmem, size = 0x10000, scoped, tag = 'input window, operand 8, single buffered']
    #allocation5 [shape = 's32[1]{0}', space=sflag, size = 0x4, scoped, tag = 'scoped memory for _forward_jit.1']
    #allocation6 [shape = 'u8[65536]{0}', space=vmem, size = 0x10000, scoped, tag = 'input window, operand 9, single buffered']
    %16 = vsyncpa [#allocation3], 0
    %17 = vsyncpa [#allocation5], 0
    // Predicated region
    $region2: #{_forward_jit.1} parent=1 // pred_check
      _
    $region3: #{_forward_jit.1} parent=1 // pred_check_branch
      %19 = sbr.rel (0) target = $region5
    $region4: #{_forward_jit.1} parent=1 // pred_region
      _
    $region5: #{_forward_jit.1} parent=1 // pred_fallthru
      _
    // Predicated region
    $region6: #{_forward_jit.1} parent=1 // pred_check
      _
    $region7: #{_forward_jit.1} parent=1 // pred_check_branch
      %21 = sbr.rel (0) target = $region9
    $region8: #{_forward_jit.1} parent=1 // pred_region
      %s23 = ssub.s32 512, 512
      %24 = vsyncadd [#allocation3], %s23
      %s25 = sshll.u32 [#allocation2], 4
      %s26 = int_to_ptr.vmem [resolvable:$true] %s25
      %31 = dma.hbm_to_vmem [thread:$0]  %s1, 512, %s26, [#allocation3], 128, 128, 8
    $region9: #{_forward_jit.1} parent=1 // pred_fallthru
      _
    // Predicated region
    $region10: #{_forward_jit.1} parent=1 // pred_check
      _
    $region11: #{_forward_jit.1} parent=1 // pred_check_branch
      %33 = sbr.rel (0) target = $region13
    $region12: #{_forward_jit.1} parent=1 // pred_region
      _
    $region13: #{_forward_jit.1} parent=1 // pred_fallthru
      _
    // Predicated region
    $region14: #{_forward_jit.1} parent=1 // pred_check
      _
    $region15: #{_forward_jit.1} parent=1 // pred_check_branch
      %35 = sbr.rel (0) target = $region17
    $region16: #{_forward_jit.1} parent=1 // pred_region
      _
    $region17: #{_forward_jit.1} parent=1 // pred_fallthru
      _
    // Predicated region
    $region18: #{_forward_jit.1} parent=1 // pred_check
      _
    $region19: #{_forward_jit.1} parent=1 // pred_check_branch
      %37 = sbr.rel (0) target = $region21
    $region20: #{_forward_jit.1} parent=1 // pred_region
      _
    $region21: #{_forward_jit.1} parent=1 // pred_fallthru
      _
    // Predicated region
    $region22: #{_forward_jit.1} parent=1 // pred_check
      _
    $region23: #{_forward_jit.1} parent=1 // pred_check_branch
      %39 = sbr.rel (0) target = $region25
    $region24: #{_forward_jit.1} parent=1 // pred_region
      _
    $region25: #{_forward_jit.1} parent=1 // pred_fallthru
      _
    // Predicated region
    $region26: #{_forward_jit.1} parent=1 // pred_check
      _
    $region27: #{_forward_jit.1} parent=1 // pred_check_branch
      %41 = sbr.rel (0) target = $region29
    $region28: #{_forward_jit.1} parent=1 // pred_region
      _
    $region29: #{_forward_jit.1} parent=1 // pred_fallthru
      _
    // Predicated region
    $region30: #{_forward_jit.1} parent=1 // pred_check
      _
    $region31: #{_forward_jit.1} parent=1 // pred_check_branch
      %43 = sbr.rel (0) target = $region33
    $region32: #{_forward_jit.1} parent=1 // pred_region
      _
    $region33: #{_forward_jit.1} parent=1 // pred_fallthru
      _
    // Predicated region
    $region34: #{_forward_jit.1} parent=1 // pred_check
      _
    $region35: #{_forward_jit.1} parent=1 // pred_check_branch
      %45 = sbr.rel (0) target = $region37
    $region36: #{_forward_jit.1} parent=1 // pred_region
      %s47 = ssub.s32 2048, 2048
      %48 = vsyncadd [#allocation5], %s47
      %s49 = sshll.u32 [#allocation4], 4
      %s50 = int_to_ptr.vmem [resolvable:$true] %s49
      %55 = dma.hbm_to_vmem [thread:$0]  %s8, 2048, %s50, [#allocation5], 128, 128, 8
    $region37: #{_forward_jit.1} parent=1 // pred_fallthru
      _
    // Predicated region
    $region38: #{_forward_jit.1} parent=1 // pred_check
      _
    $region39: #{_forward_jit.1} parent=1 // pred_check_branch
      %57 = sbr.rel (0) target = $region41
    $region40: #{_forward_jit.1} parent=1 // pred_region
      %s59 = ssub.s32 2048, 2048
      %60 = vsyncadd [#allocation5], %s59
      %s61 = sshll.u32 [#allocation6], 4
      %s62 = int_to_ptr.vmem [resolvable:$true] %s61
      %67 = dma.hbm_to_vmem [thread:$0]  %s9, 2048, %s62, [#allocation5], 128, 128, 8
    $region41: #{_forward_jit.1} parent=1 // pred_fallthru
      _
    // Predicated region
    $region42: #{_forward_jit.1} parent=1 // pred_check
      _
    $region43: #{_forward_jit.1} parent=1 // pred_check_branch
      %69 = sbr.rel (0) target = $region45
    $region44: #{_forward_jit.1} parent=1 // pred_region
      _
    $region45: #{_forward_jit.1} parent=1 // pred_fallthru
      _
    // Predicated region
    $region46: #{_forward_jit.1} parent=1 // pred_check
      _
    $region47: #{_forward_jit.1} parent=1 // pred_check_branch
      %71 = sbr.rel (0) target = $region49
    $region48: #{_forward_jit.1} parent=1 // pred_region
      %72 = dma.done [#allocation3], 512
    $region49: #{_forward_jit.1} parent=1 // pred_fallthru
      _
    // Predicated region
    $region50: #{_forward_jit.1} parent=1 // pred_check
      _
    $region51: #{_forward_jit.1} parent=1 // pred_check_branch
      %74 = sbr.rel (0) target = $region53
    $region52: #{_forward_jit.1} parent=1 // pred_region
      %75 = dma.done [#allocation5], 2048
    $region53: #{_forward_jit.1} parent=1 // pred_fallthru
      _
    // Predicated region
    $region54: #{_forward_jit.1} parent=1 // pred_check
      _
    $region55: #{_forward_jit.1} parent=1 // pred_check_branch
      %77 = sbr.rel (0) target = $region57
    $region56: #{_forward_jit.1} parent=1 // pred_region
      %78 = dma.done [#allocation5], 2048
    $region57: #{_forward_jit.1} parent=1 // pred_fallthru
      _
    %v79 = vld [vmem:[%s0] sm:$0xff]
    %v80 = vld [vmem:[#allocation2] sm:$0xff]
    %v81 = vld [vmem:[#allocation2 + $0x8] sm:$0xff]
    %v82 = vld [vmem:[#allocation2 + $0x10] sm:$0xff]
    %v83 = vld [vmem:[#allocation2 + $0x18] sm:$0xff]
    %v84 = vld [vmem:[%s2] sm:$0x1]
    %v86 = vlaneseq
    %v87 = vshrl.u32 %v86, 7
    %v88 = vsub.s32 0, %v87
    %v89 = vrot.slane %v84, %v88
    %vm91 = vcmask 261120
    %v93 = vsel %vm91, %v79, 0
    %95 = vmatprep.subr.mxu0 0.0
    %96 = vmatpush1.msra.mxu0 %v80
    %97 = vmatprep.subr.mxu0 0.0
    %98 = vmatpush1.msra.mxu0 %v81
    %99 = vmatprep.subr.mxu0 0.0
    %100 = vmatpush1.msra.mxu0 %v82
    %101 = vmatprep.subr.mxu0 0.0
    %102 = vmatpush1.msra.mxu0 %v83
    %103 = vmatprep.subr.mxu0 0.0
    %104 = vmatpush1.msra.mxu0 0.0
    %105 = vmatprep.subr.mxu0 0.0
    %106 = vmatpush1.msra.mxu0 0.0
    %107 = vmatprep.subr.mxu0 0.0
    %108 = vmatpush1.msra.mxu0 0.0
    %109 = vmatprep.subr.mxu0 0.0
    %110 = vmatpush1.msra.mxu0 0.0
    %111 = vmatprep.subr.mxu0 0.0
    %112 = vmatpush1.msra.mxu0 0.0
    %113 = vmatprep.subr.mxu0 0.0
    %114 = vmatpush1.msra.mxu0 0.0
    %115 = vmatprep.subr.mxu0 0.0
    %116 = vmatpush1.msra.mxu0 0.0
    %117 = vmatprep.subr.mxu0 0.0
    %118 = vmatpush1.msra.mxu0 0.0
    %119 = vmatprep.subr.mxu0 0.0
    %120 = vmatpush1.msra.mxu0 0.0
    %121 = vmatprep.subr.mxu0 0.0
    %122 = vmatpush1.msra.mxu0 0.0
    %123 = vmatprep.subr.mxu0 0.0
    %124 = vmatpush1.msra.mxu0 0.0
    %125 = vmatprep.subr.mxu0 0.0
    %126 = vmatpush1.msra.mxu0 0.0
    %127 = vmatprep.subr.mxu0 0.0
    %128 = vmatpush1.msra.mxu0 0.0
    %129 = vmatprep.subr.mxu0 0.0
    %130 = vmatpush1.msra.mxu0 0.0
    %131 = vmatprep.subr.mxu0 0.0
    %132 = vmatpush1.msra.mxu0 0.0
    %133 = vmatprep.subr.mxu0 0.0
    %134 = vmatpush1.msra.mxu0 0.0
    %135 = vmatprep.subr.mxu0 0.0
    %136 = vmatpush1.msra.mxu0 0.0
    %137 = vmatprep.subr.mxu0 0.0
    %138 = vmatpush1.msra.mxu0 0.0
    %139 = vmatprep.subr.mxu0 0.0
    %140 = vmatpush1.msra.mxu0 0.0
    %141 = vmatprep.subr.mxu0 0.0
    %142 = vmatpush1.msra.mxu0 0.0
    %143 = vmatprep.subr.mxu0 0.0
    %144 = vmatpush1.msra.mxu0 0.0
    %145 = vmatprep.subr.mxu0 0.0
    %146 = vmatpush1.msra.mxu0 0.0
    %147 = vmatprep.subr.mxu0 0.0
    %148 = vmatpush1.msra.mxu0 0.0
    %149 = vmatprep.subr.mxu0 0.0
    %150 = vmatpush1.msra.mxu0 0.0
    %151 = vmatprep.subr.mxu0 0.0
    %152 = vmatpush1.msra.mxu0 0.0
    %153 = vmatprep.subr.mxu0 0.0
    %154 = vmatpush1.msra.mxu0 0.0
    %155 = vmatprep.subr.mxu0 0.0
    %156 = vmatpush1.msra.mxu0 0.0
    %157 = vmatprep.subr.mxu0 0.0
    %158 = vmatpush1.msra.mxu0 0.0
    %159 = vmatprep.mubr.f32.mxu0 0.0
    %160 = vmatmul.mubr.f32.gmra.mrb[0].mxu0 %v93
    %v161 = vpop.f32.mrb[0].mxu0
    %v162 = vadd.f32 %v89, %v161
    %v163 = vpop.f32.mrb[0].mxu0
    %164 = vdwg.mxu0
    %v165 = vld [vmem:[%s3] sm:$0xff]
    %v166 = vld [vmem:[%s4] sm:$0x1]
    %v168 = vlaneseq
    %v169 = vshrl.u32 %v168, 7
    %v170 = vsub.s32 0, %v169
    %v171 = vrot.slane %v166, %v170
    %v173 = vmul.f32 %v165, %v171
    %vm174 = vcmp.gt.f32.partialorder %v173, 0.5
    %v175 = vld [vmem:[%s5] sm:$0xff]
    %vm176 = vcmp.gt.f32.partialorder %v175, 0.5
    %v177 = vld [vmem:[%s6] sm:$0xff]
    %v178 = vld [vmem:[%s7] sm:$0x1]
    %v179 = vsel %vm174, %v162, -1e+30
    %180 = vmax.xlane.f32.xlu0 %v179
    %v181 = vpop.xlane.xlu0 %180
    %v182 = vsub.f32 %v179, %v181
    %v183 = vmul.f32 %v182, 1.442695
    %v184 = vpow.pop %v183
    %185 = vadd.xlane.f32.xlu0 %v184
    %v186 = vpop.xlane.xlu0 %185
    %v187 = vrcp.pop %v186
    %v188 = vmul.f32 %v184, %v187
    %v189 = vxor.u32 %v162, 2147483648
    %v190 = vmul.f32 %v189, 1.442695
    %v191 = vpow.pop %v190
    %v192 = vadd.f32 %v191, 1.0
    %v193 = vrcp.pop %v192
    %v194 = vmul.f32 1.0, %v193
    %v195 = vsel %vm176, 1, 0
    %196 = vset.pattern.permute.xlu0 0
    %197 = vperm.xlu0 %196, %v195
    %v198 = vpop.permute.xlu0 %197
    %vm199 = vcmp.eq.s32.totalorder %v198, 1
    %v200 = vsel %vm199, %v188, %v194
    %v201 = vmul.f32 %v200, %v173
    %202 = vmax.xlane.f32.xlu0 %v201
    %v203 = vpop.xlane.xlu0 %202
    %vm204 = vcmp.eq.f32.partialorder %v201, %v203
    %vm205 = vmand %vm204, %vm174
    %v207 = vlaneseq
    %v208 = vshrl.u32 %v207, 7
    %v209 = vsub.s32 0, %v208
    %v210 = vrot.slane %v178, %v209
    %v212 = vsel %vm205, %v210, 4.0
    %213 = vmin.xlane.f32.xlu0 %v212
    %v214 = vpop.xlane.xlu0 %213
    %vm215 = vcmp.eq.f32.partialorder %v178, 0.0
    %v216 = vsel %vm215, 1, 0
    %v217 = vlaneseq
    %v218 = vshrl.u32 %v217, 7
    %v219 = vsub.s32 0, %v218
    %v220 = vrot.slane %v216, %v219
    %vm221 = vcmp.eq.s32.totalorder %v220, 1
    %v222 = vsel %vm221, %v214, 0.0
    %v223 = vmul.f32 %v222, %v165
    %225 = vset.pattern.permute.xlu0 0
    %226 = vperm.xlu0 %225, %v177
    %v227 = vpop.permute.xlu0 %226
    %vm229 = vcmp.gt.f32.partialorder %v201, %v227
    %vm230 = vmor %vm229, %vm205
    %v231 = vsel %vm230, 1.0, 0.0
    %v232 = vsel %vm199, %v223, %v231
    %v233 = vmul.f32 %v165, 100.0
    %v234 = vadd.f32 %v232, %v233
    %v235 = vld [vmem:[#allocation4] sm:$0xff]
    %v236 = vld [vmem:[#allocation4 + $0x8] sm:$0xff]
    %v237 = vld [vmem:[#allocation4 + $0x10] sm:$0xff]
    %v238 = vld [vmem:[#allocation4 + $0x18] sm:$0xff]
    %v239 = vld [vmem:[#allocation4 + $0x20] sm:$0xff]
    %v240 = vld [vmem:[#allocation4 + $0x28] sm:$0xff]
    %v241 = vld [vmem:[#allocation4 + $0x30] sm:$0xff]
    %v242 = vld [vmem:[#allocation4 + $0x38] sm:$0xff]
    %v243 = vld [vmem:[#allocation4 + $0x40] sm:$0xff]
    %v244 = vld [vmem:[#allocation4 + $0x48] sm:$0xff]
    %v245 = vld [vmem:[#allocation4 + $0x50] sm:$0xff]
    %v246 = vld [vmem:[#allocation4 + $0x58] sm:$0xff]
    %v247 = vld [vmem:[#allocation4 + $0x60] sm:$0xff]
    %v248 = vld [vmem:[#allocation4 + $0x68] sm:$0xff]
    %v249 = vld [vmem:[#allocation4 + $0x70] sm:$0xff]
    %v250 = vld [vmem:[#allocation4 + $0x78] sm:$0xff]
    %v251 = vld [vmem:[#allocation6] sm:$0xff]
    %v252 = vld [vmem:[#allocation6 + $0x8] sm:$0xff]
    %v253 = vld [vmem:[#allocation6 + $0x10] sm:$0xff]
    %v254 = vld [vmem:[#allocation6 + $0x18] sm:$0xff]
    %v255 = vld [vmem:[#allocation6 + $0x20] sm:$0xff]
    %v256 = vld [vmem:[#allocation6 + $0x28] sm:$0xff]
    %v257 = vld [vmem:[#allocation6 + $0x30] sm:$0xff]
    %v258 = vld [vmem:[#allocation6 + $0x38] sm:$0xff]
    %v259 = vld [vmem:[#allocation6 + $0x40] sm:$0xff]
    %v260 = vld [vmem:[#allocation6 + $0x48] sm:$0xff]
    %v261 = vld [vmem:[#allocation6 + $0x50] sm:$0xff]
    %v262 = vld [vmem:[#allocation6 + $0x58] sm:$0xff]
    %v263 = vld [vmem:[#allocation6 + $0x60] sm:$0xff]
    %v264 = vld [vmem:[#allocation6 + $0x68] sm:$0xff]
    %v265 = vld [vmem:[#allocation6 + $0x70] sm:$0xff]
    %v266 = vld [vmem:[#allocation6 + $0x78] sm:$0xff]
    %267 = vmatprep.subr.mxu0 0.0
    %268 = vmatpush1.msra.mxu0 %v251
    %269 = vmatprep.subr.mxu0 0.0
    %270 = vmatpush1.msra.mxu0 %v252
    %271 = vmatprep.subr.mxu0 0.0
    %272 = vmatpush1.msra.mxu0 %v253
    %273 = vmatprep.subr.mxu0 0.0
    %274 = vmatpush1.msra.mxu0 %v254
    %275 = vmatprep.subr.mxu0 0.0
    %276 = vmatpush1.msra.mxu0 %v255
    %277 = vmatprep.subr.mxu0 0.0
    %278 = vmatpush1.msra.mxu0 %v256
    %279 = vmatprep.subr.mxu0 0.0
    %280 = vmatpush1.msra.mxu0 %v257
    %281 = vmatprep.subr.mxu0 0.0
    %282 = vmatpush1.msra.mxu0 %v258
    %283 = vmatprep.subr.mxu0 0.0
    %284 = vmatpush1.msra.mxu0 %v259
    %285 = vmatprep.subr.mxu0 0.0
    %286 = vmatpush1.msra.mxu0 %v260
    %287 = vmatprep.subr.mxu0 0.0
    %288 = vmatpush1.msra.mxu0 %v261
    %289 = vmatprep.subr.mxu0 0.0
    %290 = vmatpush1.msra.mxu0 %v262
    %291 = vmatprep.subr.mxu0 0.0
    %292 = vmatpush1.msra.mxu0 %v263
    %293 = vmatprep.subr.mxu0 0.0
    %294 = vmatpush1.msra.mxu0 %v264
    %295 = vmatprep.subr.mxu0 0.0
    %296 = vmatpush1.msra.mxu0 %v265
    %297 = vmatprep.subr.mxu0 0.0
    %298 = vmatpush1.msra.mxu0 %v266
    %299 = vmatprep.subr.mxu0 0.0
    %300 = vmatpush1.msra.mxu0 0.0
    %301 = vmatprep.subr.mxu0 0.0
    %302 = vmatpush1.msra.mxu0 0.0
    %303 = vmatprep.subr.mxu0 0.0
    %304 = vmatpush1.msra.mxu0 0.0
    %305 = vmatprep.subr.mxu0 0.0
    %306 = vmatpush1.msra.mxu0 0.0
    %307 = vmatprep.subr.mxu0 0.0
    %308 = vmatpush1.msra.mxu0 0.0
    %309 = vmatprep.subr.mxu0 0.0
    %310 = vmatpush1.msra.mxu0 0.0
    %311 = vmatprep.subr.mxu0 0.0
    %312 = vmatpush1.msra.mxu0 0.0
    %313 = vmatprep.subr.mxu0 0.0
    %314 = vmatpush1.msra.mxu0 0.0
    %315 = vmatprep.subr.mxu0 0.0
    %316 = vmatpush1.msra.mxu0 0.0
    %317 = vmatprep.subr.mxu0 0.0
    %318 = vmatpush1.msra.mxu0 0.0
    %319 = vmatprep.subr.mxu0 0.0
    %320 = vmatpush1.msra.mxu0 0.0
    %321 = vmatprep.subr.mxu0 0.0
    %322 = vmatpush1.msra.mxu0 0.0
    %323 = vmatprep.subr.mxu0 0.0
    %324 = vmatpush1.msra.mxu0 0.0
    %325 = vmatprep.subr.mxu0 0.0
    %326 = vmatpush1.msra.mxu0 0.0
    %327 = vmatprep.subr.mxu0 0.0
    %328 = vmatpush1.msra.mxu0 0.0
    %329 = vmatprep.subr.mxu0 0.0
    %330 = vmatpush1.msra.mxu0 0.0
    %331 = vmatprep.mubr.f32.mxu0 0.0
    %332 = vmatmul.mubr.f32.gmra.mrb[0].mxu0 %v234
    %v333 = vpop.f32.mrb[0].mxu0
    %v334 = vadd.f32 0.0, %v333
    %v335 = vpop.f32.mrb[0].mxu0
    %336 = vdwg.mxu0
    %337 = vmatprep.subr.mxu0 0.0
    %338 = vmatpush1.msra.mxu0 %v235
    %339 = vmatprep.subr.mxu0 0.0
    %340 = vmatpush1.msra.mxu0 %v236
    %341 = vmatprep.subr.mxu0 0.0
    %342 = vmatpush1.msra.mxu0 %v237
    %343 = vmatprep.subr.mxu0 0.0
    %344 = vmatpush1.msra.mxu0 %v238
    %345 = vmatprep.subr.mxu0 0.0
    %346 = vmatpush1.msra.mxu0 %v239
    %347 = vmatprep.subr.mxu0 0.0
    %348 = vmatpush1.msra.mxu0 %v240
    %349 = vmatprep.subr.mxu0 0.0
    %350 = vmatpush1.msra.mxu0 %v241
    %351 = vmatprep.subr.mxu0 0.0
    %352 = vmatpush1.msra.mxu0 %v242
    %353 = vmatprep.subr.mxu0 0.0
    %354 = vmatpush1.msra.mxu0 %v243
    %355 = vmatprep.subr.mxu0 0.0
    %356 = vmatpush1.msra.mxu0 %v244
    %357 = vmatprep.subr.mxu0 0.0
    %358 = vmatpush1.msra.mxu0 %v245
    %359 = vmatprep.subr.mxu0 0.0
    %360 = vmatpush1.msra.mxu0 %v246
    %361 = vmatprep.subr.mxu0 0.0
    %362 = vmatpush1.msra.mxu0 %v247
    %363 = vmatprep.subr.mxu0 0.0
    %364 = vmatpush1.msra.mxu0 %v248
    %365 = vmatprep.subr.mxu0 0.0
    %366 = vmatpush1.msra.mxu0 %v249
    %367 = vmatprep.subr.mxu0 0.0
    %368 = vmatpush1.msra.mxu0 %v250
    %369 = vmatprep.subr.mxu0 0.0
    %370 = vmatpush1.msra.mxu0 0.0
    %371 = vmatprep.subr.mxu0 0.0
    %372 = vmatpush1.msra.mxu0 0.0
    %373 = vmatprep.subr.mxu0 0.0
    %374 = vmatpush1.msra.mxu0 0.0
    %375 = vmatprep.subr.mxu0 0.0
    %376 = vmatpush1.msra.mxu0 0.0
    %377 = vmatprep.subr.mxu0 0.0
    %378 = vmatpush1.msra.mxu0 0.0
    %379 = vmatprep.subr.mxu0 0.0
    %380 = vmatpush1.msra.mxu0 0.0
    %381 = vmatprep.subr.mxu0 0.0
    %382 = vmatpush1.msra.mxu0 0.0
    %383 = vmatprep.subr.mxu0 0.0
    %384 = vmatpush1.msra.mxu0 0.0
    %385 = vmatprep.subr.mxu0 0.0
    %386 = vmatpush1.msra.mxu0 0.0
    %387 = vmatprep.subr.mxu0 0.0
    %388 = vmatpush1.msra.mxu0 0.0
    %389 = vmatprep.subr.mxu0 0.0
    %390 = vmatpush1.msra.mxu0 0.0
    %391 = vmatprep.subr.mxu0 0.0
    %392 = vmatpush1.msra.mxu0 0.0
    %393 = vmatprep.subr.mxu0 0.0
    %394 = vmatpush1.msra.mxu0 0.0
    %395 = vmatprep.subr.mxu0 0.0
    %396 = vmatpush1.msra.mxu0 0.0
    %397 = vmatprep.subr.mxu0 0.0
    %398 = vmatpush1.msra.mxu0 0.0
    %399 = vmatprep.subr.mxu0 0.0
    %400 = vmatpush1.msra.mxu0 0.0
    %401 = vmatprep.mubr.f32.mxu0 0.0
    %402 = vmatmul.mubr.f32.gmra.mrb[0].mxu0 %v201
    %v403 = vpop.f32.mrb[0].mxu0
    %v404 = vadd.f32 %v334, %v403
    %v405 = vpop.f32.mrb[0].mxu0
    %406 = vdwg.mxu0
    %v407 = vld [vmem:[%s10] sm:$0x1]
    %v408 = vmul.f32 %v407, 100.0
    %v410 = vlaneseq
    %v411 = vshrl.u32 %v410, 7
    %v412 = vsub.s32 0, %v411
    %v413 = vrot.slane %v408, %v412
    %v415 = vsub.f32 %v404, %v413
    %416 = vst [vmem:[%s11] sm:$0xff] %v415
    // Predicated region
    $region58: #{_forward_jit.1} parent=1 // pred_check
      _
    $region59: #{_forward_jit.1} parent=1 // pred_check_branch
      %418 = sbr.rel (0) target = $region61
    $region60: #{_forward_jit.1} parent=1 // pred_region
      _
    $region61: #{_forward_jit.1} parent=1 // pred_fallthru
      _
    // Predicated region
    $region62: #{_forward_jit.1} parent=1 // pred_check
      _
    $region63: #{_forward_jit.1} parent=1 // pred_check_branch
      %420 = sbr.rel (0) target = $region65
    $region64: #{_forward_jit.1} parent=1 // pred_region
      _
    $region65: #{_forward_jit.1} parent=1 // pred_fallthru
      _
    %421 = vsyncpa [#allocation3], 1
    %422 = vsyncpa [#allocation5], 1

</llo_original>
